<compile_context>
chip_gen: v5e
topology: v5e:2x2
jax: 0.10.0
libtpu: 0.0.40
codegen_flags: <defaults>
</compile_context>

<pallas_src>
import numpy as np

import jax
import jax.numpy as jnp
from jax.experimental import pallas as pl
from jax.experimental.pallas import tpu as pltpu


# ----------------------------------------------------------------------------
# Kernels
# ----------------------------------------------------------------------------

def _conv_kernel_per_sample(x_ref, w_ref, b_ref, o_ref):
    # x_ref: (1, K, tp)  K = 4*C, tp = pixel tile (lanes)
    # w_ref: (Cout, K)   Cout = 2*C           (grid-invariant)
    # b_ref: (Cout, 1)                        (grid-invariant)
    # o_ref: (1, Cout, tp)
    y = jnp.dot(w_ref[...], x_ref[0], preferred_element_type=jnp.float32)
    o_ref[0] = (y + b_ref[...]).astype(o_ref.dtype)


def _conv_kernel_folded(x_ref, w_ref, b_ref, o_ref):
    # x_ref: (K, tl)   tl = lane tile over the flattened (N * Ho * Wo) axis
    # w_ref: (Cout, K)
    # b_ref: (Cout, 1)
    # o_ref: (Cout, tl)
    y = jnp.dot(w_ref[...], x_ref[...], preferred_element_type=jnp.float32)
    o_ref[...] = (y + b_ref[...]).astype(o_ref.dtype)


# ----------------------------------------------------------------------------
# VMEM budgeting / tiling
# ----------------------------------------------------------------------------

def _vmem_capacity_bytes():
    """Per-core VMEM capacity; conservative 64 MiB fallback (v7x-sized)."""
    try:
        info = pltpu.get_tpu_info()
        cap = getattr(info, "vmem_capacity_bytes", None)
        if cap:
            return int(cap)
    except Exception:
        pass
    return 64 * 1024 * 1024


def _pick_lane_tile(L, K, Cout, itemsize, out_itemsize, vmem_cap):
    """Lane-tile size: maximal, 128-aligned, VMEM-budgeted (incl. resident
    weights), with a remainder-aware snap so the final tile is not mostly empty."""
    if L <= 128:
        return L
    budget = int(min(vmem_cap, 128 * 1024 * 1024) * 0.55)
    # Double-buffered resident weights + bias (no pl.Buffered(1) used).
    fixed = 2 * Cout * (K * itemsize + 4)
    # Double-buffered input + output pixel blocks, per lane column.
    per_col = 2 * (K * itemsize + Cout * out_itemsize)
    avail = max(budget - fixed, per_col * 128)
    max_tp = min(8192, max(128, (avail // per_col) // 128 * 128))
    if L <= max_tp:
        return L  # single full-width tile (block == full dim, always legal)

    best_tp, best_pad = max_tp, None
    cand = max_tp
    while cand >= 128 and cand > max_tp - 128 * 32:
        rem = L % cand
        if rem == 0 or rem >= int(0.85 * cand):
            return cand
        pad = cand - rem
        if best_pad is None or pad < best_pad:
            best_tp, best_pad = cand, pad
        cand -= 128
    return best_tp


# ----------------------------------------------------------------------------
# Conv2d(kernel=2, stride=2, padding=0) via Pallas
# ----------------------------------------------------------------------------

def _conv2x2_stride2(x, conv_weight, conv_bias, *, compute_dtype=jnp.float32,
                     out_dtype=jnp.float32):
    """2x2 / stride-2 conv, NCHW in -> NCHW out, matmul kernel on the MXU."""
    N, C, H, W = x.shape
    Cout = conv_weight.shape[0]
    Ho, Wo = H // 2, W // 2
    if (H, W) != (2 * Ho, 2 * Wo):
        x = x[:, :, :2 * Ho, :2 * Wo]  # padding=0 drops the odd trailing row/col

    K = 4 * C
    P = Ho * Wo

    wcat = conv_weight.reshape(Cout, K).astype(compute_dtype)
    if conv_bias is None:
        b2d = jnp.zeros((Cout, 1), jnp.float32)
    else:
        b2d = conv_bias.reshape(Cout, 1).astype(jnp.float32)

    # Space-to-depth (single wrapper pass; see TODO at top of file).
    xr = x.astype(compute_dtype).reshape(N, C, Ho, 2, Wo, 2)  # (n,c,i,kh,j,kw)

    cap = _vmem_capacity_bytes()
    vmem_limit = int(min(cap, 128 * 1024 * 1024) * 0.85)
    itemsize = jnp.dtype(compute_dtype).itemsize
    out_itemsize = jnp.dtype(out_dtype).itemsize

    if P < 128:
        # --- small feature maps: fold the batch into the lane axis -----------
        L = N * P
        xcat = xr.transpose(1, 3, 5, 0, 2, 4).reshape(K, L)      # (4C, N*P)
        tl = _pick_lane_tile(L, K, Cout, itemsize, out_itemsize, cap)
        grid = (pl.cdiv(L, tl),)

        y = pl.pallas_call(
            _conv_kernel_folded,
            out_shape=jax.ShapeDtypeStruct((Cout, L), out_dtype),
            grid_spec=pltpu.PrefetchScalarGridSpec(
                num_scalar_prefetch=0,
                grid=grid,
                in_specs=[
                    pl.BlockSpec((K, tl), lambda p: (0, p)),
                    pl.BlockSpec((Cout, K), lambda p: (0, 0)),
                    pl.BlockSpec((Cout, 1), lambda p: (0, 0)),
                ],
                out_specs=pl.BlockSpec((Cout, tl), lambda p: (0, p)),
            ),
            compiler_params=pltpu.CompilerParams(
                dimension_semantics=("parallel",),
                vmem_limit_bytes=vmem_limit,
            ),
        )(xcat, wcat, b2d)
        # Tiny tensors in this regime: the output transpose back to NCHW is cheap.
        return y.reshape(Cout, N, Ho, Wo).transpose(1, 0, 2, 3)

    # --- large feature maps: per-sample layout, no output transpose ----------
    xcat = xr.transpose(0, 1, 3, 5, 2, 4).reshape(N, K, P)        # (N, 4C, P)
    tp = _pick_lane_tile(P, K, Cout, itemsize, out_itemsize, cap)
    grid = (N, pl.cdiv(P, tp))

    y = pl.pallas_call(
        _conv_kernel_per_sample,
        out_shape=jax.ShapeDtypeStruct((N, Cout, P), out_dtype),
        grid_spec=pltpu.PrefetchScalarGridSpec(
            num_scalar_prefetch=0,
            grid=grid,
            in_specs=[
                pl.BlockSpec((1, K, tp), lambda n, p: (n, 0, p)),
                pl.BlockSpec((Cout, K), lambda n, p: (0, 0)),
                pl.BlockSpec((Cout, 1), lambda n, p: (0, 0)),
            ],
            out_specs=pl.BlockSpec((1, Cout, tp), lambda n, p: (n, 0, p)),
        ),
        compiler_params=pltpu.CompilerParams(
            dimension_semantics=("parallel", "parallel"),
            vmem_limit_bytes=vmem_limit,
        ),
    )(xcat, wcat, b2d)

    return y.reshape(N, Cout, Ho, Wo)   # free reshape, output stays NCHW


# ----------------------------------------------------------------------------
# Norm post-ops / full module forward
# ----------------------------------------------------------------------------

def _group_norm(y, num_groups, gamma, beta, eps=1e-3):
    N, C2, Ho, Wo = y.shape
    g = y.reshape(N, num_groups, C2 // num_groups, Ho, Wo).astype(jnp.float32)
    mean = g.mean(axis=(2, 3, 4), keepdims=True)
    var = g.var(axis=(2, 3, 4), keepdims=True)
    g = (g - mean) * jax.lax.rsqrt(var + eps)
    y = g.reshape(N, C2, Ho, Wo)
    return y * gamma.reshape(1, C2, 1, 1) + beta.reshape(1, C2, 1, 1)


def hierarchical_downsampling_block(x, conv_weight, conv_bias=None, *,
                                    norm=None, norm_params=None, eps=1e-3,
                                    compute_dtype=jnp.float32):
    """x: (N, C, H, W). conv_weight: (2C, C, 2, 2). conv_bias: (2C,) iff norm is None."""
    Cout = conv_weight.shape[0]
    p = norm_params or {}
    gamma = p.get("gamma", jnp.ones((Cout,), jnp.float32))
    beta = p.get("beta", jnp.zeros((Cout,), jnp.float32))

    if norm == "batch":
        # Eval-mode BatchNorm folded into the conv weights/bias -> no post-op.
        # TODO(synk): training-mode batch statistics are not implemented.
        rm = p.get("running_mean", jnp.zeros((Cout,), jnp.float32))
        rv = p.get("running_var", jnp.ones((Cout,), jnp.float32))
        inv = gamma * jax.lax.rsqrt(rv + eps)
        w_eff = conv_weight.astype(jnp.float32) * inv[:, None, None, None]
        b_eff = beta - rm * inv
        return _conv2x2_stride2(x, w_eff, b_eff, compute_dtype=compute_dtype)

    bias = conv_bias if norm is None else None
    y = _conv2x2_stride2(x, conv_weight, bias, compute_dtype=compute_dtype)
    if norm is None:
        return y

    if norm == "layer":
        groups = 1
    elif norm == "group":
        if Cout % 4 != 0:
            raise ValueError("GroupNorm(2C/4) requires 2C to be divisible by 4")
        groups = Cout // 4
    elif norm == "instance":
        groups = Cout
    else:
        raise ValueError(f"unknown norm: {norm!r}")
    # TODO(synk): group statistics are a plain-JAX pass (one extra read of y);
    # in-kernel sum/sum-of-squares accumulation would remove it.
    return _group_norm(y, groups, gamma, beta, eps)


# ----------------------------------------------------------------------------
# Independent references (for verification only)
# ----------------------------------------------------------------------------

def reference_conv(x, w, b):
    """Pure-JAX reference matching PyTorch Conv2d(kernel=2, stride=2, padding=0)."""
    y = jax.lax.conv_general_dilated(
        x, w, window_strides=(2, 2), padding="VALID",
        dimension_numbers=("NCHW", "OIHW", "NCHW"),
        precision=jax.lax.Precision.HIGHEST)
    if b is not None:
        y = y + b.reshape(1, -1, 1, 1)
    return y


if __name__ == "__main__":
    key = jax.random.PRNGKey(0)
    kx, kw, kx2, kg = jax.random.split(key, 4)

    N, C, H, W = 2, 4, 16, 16
    Cout = 2 * C

    x = jax.random.normal(kx, (N, C, H, W), dtype=jnp.float32)

    # Mirror PyTorch init: xavier_uniform_ (gain=1) on (2C, C, 2, 2), zero bias.
    fan_in, fan_out = C * 4, Cout * 4
    bound = float(np.sqrt(6.0 / (fan_in + fan_out)))
    w = jax.random.uniform(kw, (Cout, C, 2, 2), jnp.float32, -bound, bound)
    b = jnp.zeros((Cout,), jnp.float32)

    # 1) norm=None: conv + bias (small P -> batch-folded lane-dense layout).
    out = jax.block_until_ready(hierarchical_downsampling_block(x, w, b, norm=None))
    ref = reference_conv(x, w, b)
    np.testing.assert_allclose(np.asarray(out), np.asarray(ref), rtol=1e-4, atol=1e-4)
    assert out.shape == (N, Cout, H // 2, W // 2)

    # 2) norm='group': conv (no bias) in Pallas + GroupNorm post-op.
    out_g = jax.block_until_ready(hierarchical_downsampling_block(x, w, None, norm="group"))
    ref_g = _group_norm(reference_conv(x, w, None), Cout // 4,
                        jnp.ones((Cout,), jnp.float32),
                        jnp.zeros((Cout,), jnp.float32), 1e-3)
    np.testing.assert_allclose(np.asarray(out_g), np.asarray(ref_g), rtol=1e-4, atol=1e-4)

    # 3) norm='batch' (eval): folded into the conv weights/bias, no post-op pass.
    gamma = jax.random.uniform(kg, (Cout,), jnp.float32, 0.5, 1.5)
    beta = jnp.linspace(-0.3, 0.3, Cout).astype(jnp.float32)
    rm = jnp.linspace(-0.2, 0.2, Cout).astype(jnp.float32)
    rv = jnp.linspace(0.5, 1.5, Cout).astype(jnp.float32)
    out_b = jax.block_until_ready(hierarchical_downsampling_block(
        x, w, None, norm="batch",
        norm_params={"gamma": gamma, "beta": beta,
                     "running_mean": rm, "running_var": rv}))
    yb = reference_conv(x, w, None)
    ref_b = ((yb - rm.reshape(1, -1, 1, 1)) * jax.lax.rsqrt(rv + 1e-3).reshape(1, -1, 1, 1)
             * gamma.reshape(1, -1, 1, 1) + beta.reshape(1, -1, 1, 1))
    np.testing.assert_allclose(np.asarray(out_b), np.asarray(ref_b), rtol=1e-4, atol=1e-4)

    # 4) larger feature map (P >= 128): per-sample layout, no output transpose.
    x2 = jax.random.normal(kx2, (N, C, 16, 32), dtype=jnp.float32)
    out2 = jax.block_until_ready(hierarchical_downsampling_block(x2, w, b, norm=None))
    ref2 = reference_conv(x2, w, b)
    np.testing.assert_allclose(np.asarray(out2), np.asarray(ref2), rtol=1e-4, atol=1e-4)

    # 5) odd spatial dims: padding=0 drops the trailing row/column.
    x3 = jax.random.normal(kx, (1, C, 9, 9), dtype=jnp.float32)
    out3 = jax.block_until_ready(hierarchical_downsampling_block(x3, w, b, norm=None))
    ref3 = reference_conv(x3, w, b)
    np.testing.assert_allclose(np.asarray(out3), np.asarray(ref3), rtol=1e-4, atol=1e-4)

    print("KERNEL_OK")
</pallas_src>

<mosaic_0001>
module attributes {stable_mosaic.version = 11 : i64} {
  func.func @_conv_kernel_folded(%arg0: i32, %arg1: memref<16x128xf32, #tpu.memory_space<vmem>>, %arg2: memref<8x16xf32, #tpu.memory_space<vmem>>, %arg3: memref<8x1xf32, #tpu.memory_space<vmem>>, %arg4: memref<8x128xf32, #tpu.memory_space<vmem>>) attributes {dimension_semantics = [#tpu.dimension_semantics<parallel>], iteration_bounds = array<i64: 1>, scalar_prefetch = 0 : i64, scratch_operands = 0 : i64, tpu.core_type = #tpu.core_type<tc>, window_params = [{transform_indices = @transform_0, window_bounds = array<i64: 16, 128>}, {pipeline_mode = #tpu.pipeline_mode<synchronous>, transform_indices = @transform_1, window_bounds = array<i64: 8, 16>}, {pipeline_mode = #tpu.pipeline_mode<synchronous>, transform_indices = @transform_2, window_bounds = array<i64: 8, 1>}, {transform_indices = @transform_3, window_bounds = array<i64: 8, 128>}]} {
    %c0 = arith.constant 0 : index
    %c0_0 = arith.constant 0 : index
    %0 = vector.load %arg2[%c0, %c0_0] : memref<8x16xf32, #tpu.memory_space<vmem>>, vector<8x16xf32>
    %c0_1 = arith.constant 0 : index
    %c0_2 = arith.constant 0 : index
    %1 = vector.load %arg1[%c0_1, %c0_2] : memref<16x128xf32, #tpu.memory_space<vmem>>, vector<16x128xf32>
    %cst = arith.constant dense<0.000000e+00> : vector<8x128xf32>
    %2 = tpu.matmul %0, %1, %cst {dimension_numbers = #tpu.dot_dimension_numbers<[1], [0], [0], [1], [0, 0, 1, 1], [], []>} : vector<8x16xf32>, vector<16x128xf32>, vector<8x128xf32> -> vector<8x128xf32>
    %c0_3 = arith.constant 0 : index
    %c0_4 = arith.constant 0 : index
    %3 = vector.load %arg3[%c0_3, %c0_4] : memref<8x1xf32, #tpu.memory_space<vmem>>, vector<8x1xf32>
    %4 = vector.broadcast %3 : vector<8x1xf32> to vector<8x128xf32>
    %5 = arith.addf %2, %4 : vector<8x128xf32>
    %c0_5 = arith.constant 0 : index
    %c0_6 = arith.constant 0 : index
    %6 = vector.load %arg4[%c0_5, %c0_6] : memref<8x128xf32, #tpu.memory_space<vmem>>, vector<8x128xf32>
    tpu.vector_store %arg4[%c0_5, %c0_6], %5 {strides = array<i32>} : memref<8x128xf32, #tpu.memory_space<vmem>>, vector<8x128xf32>,
    return
  }
  func.func @transform_0(%arg0: i32) -> (i32, i32) {
    %c0_i32 = arith.constant 0 : i32
    %c0_i32_0 = arith.constant 0 : i32
    return %c0_i32, %arg0 : i32, i32
  }
  func.func @transform_1(%arg0: i32) -> (i32, i32) {
    %c0_i32 = arith.constant 0 : i32
    %c0_i32_0 = arith.constant 0 : i32
    %c0_i32_1 = arith.constant 0 : i32
    return %c0_i32, %c0_i32_0 : i32, i32
  }
  func.func @transform_2(%arg0: i32) -> (i32, i32) {
    %c0_i32 = arith.constant 0 : i32
    %c0_i32_0 = arith.constant 0 : i32
    %c0_i32_1 = arith.constant 0 : i32
    return %c0_i32, %c0_i32_0 : i32, i32
  }
  func.func @transform_3(%arg0: i32) -> (i32, i32) {
    %c0_i32 = arith.constant 0 : i32
    %c0_i32_0 = arith.constant 0 : i32
    return %c0_i32, %arg0 : i32, i32
  }
}

</mosaic_0001>

<llo_original>
// kernel: tpu_custom_call.1
$region0: #{tpu_custom_call.1}
  #allocation0 [shape = 'u32[]', space=smem, size = 0x4, offset = 0x4, fixed_abs, tag = 'smem constant byte address 0x4 - core index']
  #allocation1 [shape = 'u32[72,128]{1,0:T(1,128)}', space=vmem, size = 0x9000, scoped, tag = 'internal scratch']
  %s0 = inlined_call_operand.hbm [shape: f32[16,128], index: 0, kind: input, shape index: {}]
  %s1 = inlined_call_operand.vmem [shape: f32[8,16], index: 1, kind: input, shape index: {}]
  %s2 = inlined_call_operand.vmem [shape: f32[8,1], index: 2, kind: input, shape index: {}]
  %s3 = inlined_call_operand.hbm [shape: f32[8,128], index: 3, kind: output, shape index: {}]
  %s4 = sld [smem:[#allocation0]]
  $region26: #{tpu_custom_call.1} parent=0
    _
  %s6 = ssub.s32 1, %s4
  %s7 = scalar_select 0, %s6, %s4
  $region1: #{tpu_custom_call.1} parent=0
    #allocation2 [shape = 'u8[8192]{0}', space=vmem, size = 0x2000, scoped, tag = 'input window, operand 0, single buffered']
    #allocation3 [shape = 's32[1]{0}', space=sflag, size = 0x4, scoped, tag = 'scoped memory for tpu_custom_call.1']
    #allocation4 [shape = 's32[1]{0}', space=sflag, size = 0x4, scoped, tag = 'scoped memory for tpu_custom_call.1']
    #allocation5 [shape = 'u8[4096]{0}', space=vmem, size = 0x1000, scoped, tag = 'output window, operand 0, single buffered']
    %8 = vsyncpa [#allocation3], 0
    %9 = vsyncpa [#allocation4], 0
    // Predicated region
    $region2: #{tpu_custom_call.1} parent=1 // pred_check
      _
    $region3: #{tpu_custom_call.1} parent=1 // pred_check_branch
      %11 = sbr.rel (0) target = $region5
    $region4: #{tpu_custom_call.1} parent=1 // pred_region
      %13 = vsyncadd [#allocation3], 0
      %s14 = sshll.u32 %s0, 4
      %s15 = int_to_ptr.hbm [resolvable:$true] %s14
      %s16 = sshll.u32 [#allocation2], 4
      %s17 = int_to_ptr.vmem [resolvable:$true] %s16
      %22 = dma.hbm_to_vmem [thread:$0]  %s15, 256, %s17, [#allocation3], 128, 128, 8
    $region5: #{tpu_custom_call.1} parent=1 // pred_fallthru
      _
    // Predicated region
    $region6: #{tpu_custom_call.1} parent=1 // pred_check
      _
    $region7: #{tpu_custom_call.1} parent=1 // pred_check_branch
      %24 = sbr.rel (0) target = $region9
    $region8: #{tpu_custom_call.1} parent=1 // pred_region
      _
    $region9: #{tpu_custom_call.1} parent=1 // pred_fallthru
      _
    // Predicated region
    $region10: #{tpu_custom_call.1} parent=1 // pred_check
      _
    $region11: #{tpu_custom_call.1} parent=1 // pred_check_branch
      %26 = sbr.rel (0) target = $region13
    $region12: #{tpu_custom_call.1} parent=1 // pred_region
      _
    $region13: #{tpu_custom_call.1} parent=1 // pred_fallthru
      _
    // Predicated region
    $region14: #{tpu_custom_call.1} parent=1 // pred_check
      _
    $region15: #{tpu_custom_call.1} parent=1 // pred_check_branch
      %28 = sbr.rel (0) target = $region17
    $region16: #{tpu_custom_call.1} parent=1 // pred_region
      %30 = dma.done [#allocation3], 256
    $region17: #{tpu_custom_call.1} parent=1 // pred_fallthru
      _
    %v31 = vld [vmem:[%s1] sm:$0xff]
    %v32 = vld [vmem:[#allocation2] sm:$0xff]
    %v33 = vld [vmem:[#allocation2 + $0x8] sm:$0xff]
    %v34 = vld [vmem:[%s2] sm:$0xff]
    %36 = vset.pattern.permute.xlu0 0
    %37 = vperm.xlu0 %36, %v34
    %v38 = vpop.permute.xlu0 %37
    %vm40 = vcmask 130048
    %v42 = vsel %vm40, %v31, 0
    %44 = vmatpush.msra.mxu0 0.0
    %45 = vmatpush.msra.mxu0 0.0
    %46 = vmatpush.msra.mxu0 0.0
    %47 = vmatpush.msra.mxu0 0.0
    %48 = vmatpush.msra.mxu0 0.0
    %49 = vmatpush.msra.mxu0 0.0
    %50 = vmatpush.msra.mxu0 0.0
    %51 = vmatpush.msra.mxu0 0.0
    %52 = vmatpush.msra.mxu0 0.0
    %53 = vmatpush.msra.mxu0 0.0
    %54 = vmatpush.msra.mxu0 0.0
    %55 = vmatpush.msra.mxu0 0.0
    %56 = vmatpush.msra.mxu0 0.0
    %57 = vmatpush.msra.mxu0 0.0
    %58 = vmatpush.msra.mxu0 %v33
    %59 = vmatpush.msra.mxu0 %v32
    %60 = vmatmul.f32.gmra.mxu0 %v42
    %v61 = vpop.f32.mrf.mxu0
    %v62 = vadd.f32 %v38, %v61
    %63 = vdwg.mxu0
    %64 = vst [vmem:[#allocation5] sm:$0xff] %v62
    // Predicated region
    $region18: #{tpu_custom_call.1} parent=1 // pred_check
      _
    $region19: #{tpu_custom_call.1} parent=1 // pred_check_branch
      %66 = sbr.rel (0) target = $region21
    $region20: #{tpu_custom_call.1} parent=1 // pred_region
      %68 = vsyncadd [#allocation4], 0
      %s70 = sshll.u32 [#allocation5], 4
      %s71 = int_to_ptr.vmem [resolvable:$true] %s70
      %s72 = sshll.u32 %s3, 4
      %s73 = int_to_ptr.hbm [resolvable:$true] %s72
      %75 = dma.vmem_to_hbm [thread:$0]  %s71, 128, %s73, [#allocation4]
    $region21: #{tpu_custom_call.1} parent=1 // pred_fallthru
      _
    // Predicated region
    $region22: #{tpu_custom_call.1} parent=1 // pred_check
      _
    $region23: #{tpu_custom_call.1} parent=1 // pred_check_branch
      %77 = sbr.rel (0) target = $region25
    $region24: #{tpu_custom_call.1} parent=1 // pred_region
      %79 = dma.done [#allocation4], 128
    $region25: #{tpu_custom_call.1} parent=1 // pred_fallthru
      _
    %80 = vsyncpa [#allocation3], 1
    %81 = vsyncpa [#allocation4], 1

</llo_original>
